<compile_context>
chip_gen: v5e
topology: v5e:2x2
jax: 0.10.0
libtpu: 0.0.40
codegen_flags: <defaults>
</compile_context>

<pallas_src>
import functools

import jax
import jax.numpy as jnp
import numpy as np
from jax.experimental import pallas as pl
from jax.experimental.pallas import tpu as pltpu


def _center_loss_kernel(feat_ref, label_ref, centers_t_ref, c_sq_ref, out_ref,
                        own_acc, all_acc, *, tile_b, actual_batch, scale,
                        dot_precision, needs_row_mask):
    i = pl.program_id(0)
    last = pl.num_programs(0) - 1

    @pl.when(i == 0)
    def _init():
        own_acc[...] = jnp.zeros_like(own_acc)
        all_acc[...] = jnp.zeros_like(all_acc)

    feat = feat_ref[...]                        # (TILE_B, D), native dtype
    labels = label_ref[...]                     # (TILE_B, 1) int32
    centers_t = centers_t_ref[...]              # (D, C), feat dtype (MXU RHS)
    c_sq = c_sq_ref[...]                        # (1, C) f32

    num_classes = centers_t.shape[1]

    # ||f_i||^2: one lane-reduce per row, accumulated in f32 on the VPU/XLU.
    feat_f32 = feat.astype(jnp.float32)
    f_sq = jnp.sum(feat_f32 * feat_f32, axis=-1, keepdims=True)      # (TILE_B, 1)

    # f @ centers^T on the MXU, f32 accumulation.
    fc = jnp.dot(feat, centers_t,
                 preferred_element_type=jnp.float32,
                 precision=dot_precision)                            # (TILE_B, C)

    d = f_sq - 2.0 * fc + c_sq                                       # (TILE_B, C)

    # Mask rows of a (possibly partial) last tile so padded rows contribute 0.
    # Compiled out (Python-level) when the batch divides evenly into tiles.
    if needs_row_mask:
        row_ids = i * tile_b + jax.lax.broadcasted_iota(jnp.int32, (tile_b, 1), 0)
        d = jnp.where(row_ids < actual_batch, d, 0.0)

    # One-hot selection of each sample's own-center distance.
    class_ids = jax.lax.broadcasted_iota(jnp.int32, (tile_b, num_classes), 1)
    own = class_ids == labels                                        # (TILE_B, C)

    own_acc[...] += jnp.sum(jnp.where(own, d, 0.0), keepdims=True)
    all_acc[...] += jnp.sum(d, keepdims=True)

    @pl.when(i == last)
    def _finalize():
        d_own = own_acc[...]                     # (1, 1)
        distocen = all_acc[...] - d_own          # sum over the non-own centers
        out_ref[...] = d_own * (1.0 + 1.0 / distocen) * jnp.float32(scale)


def _pick_tile_b(batch, feat_dim, itemsize):
    """Batch tile: big enough to amortize per-step overhead, small enough that
    2x double-buffered feat tiles stay well inside the default scoped VMEM on
    every chip (v7x has only 64 MiB physical / 32 MiB default scoped)."""
    per_buffer_budget = 8 * 1024 * 1024          # bytes per feat buffer (x2 buffered)
    tb = per_buffer_budget // max(1, feat_dim * itemsize)
    tb = max(8, min(512, (tb // 8) * 8))
    return int(min(tb, batch))


def center_loss_a(feat, label, centers, size_average=True, tile_b=None):
    """JAX wrapper mirroring CenterLossA.forward(feat, label)."""
    batch = feat.shape[0]
    feat2d = feat.reshape(batch, -1)
    feat_dim = feat2d.shape[1]
    if feat_dim != centers.shape[1]:
        raise ValueError(
            "Center's dim: {0} should be equal to input feature's dim: {1}".format(
                centers.shape[1], feat_dim))

    num_classes = centers.shape[0]
    divisor = float(batch) if size_average else 1.0
    scale = 0.5 / divisor

    label2d = label.astype(jnp.int32).reshape(batch, 1)

    # Precompute MXU-friendly center operands in the wrapper (C x D is tiny).
    centers_f32 = centers.astype(jnp.float32)
    centers_t = centers_f32.astype(feat2d.dtype).T                   # (D, C)
    c_sq = jnp.sum(centers_f32 * centers_f32, axis=1)[None, :]       # (1, C) f32

    itemsize = jnp.dtype(feat2d.dtype).itemsize
    if tile_b is None:
        tile_b = _pick_tile_b(batch, feat_dim, itemsize)
    tile_b = int(min(tile_b, batch))
    num_tiles = pl.cdiv(batch, tile_b)
    needs_row_mask = (batch % tile_b) != 0

    # Full f32 fidelity on the MXU when the input is f32 (matches torch math).
    dot_precision = (jax.lax.Precision.HIGHEST
                     if feat2d.dtype == jnp.float32 else jax.lax.Precision.DEFAULT)

    kernel = functools.partial(
        _center_loss_kernel,
        tile_b=tile_b, actual_batch=batch, scale=scale,
        dot_precision=dot_precision, needs_row_mask=needs_row_mask)

    cost = pl.CostEstimate(
        flops=2 * batch * feat_dim * (num_classes + 2),
        transcendentals=0,
        bytes_accessed=(batch * feat_dim * itemsize + batch * 4
                        + feat_dim * num_classes * itemsize + num_classes * 4 + 4))

    out = pl.pallas_call(
        kernel,
        out_shape=jax.ShapeDtypeStruct((1, 1), jnp.float32),
        grid_spec=pltpu.PrefetchScalarGridSpec(
            num_scalar_prefetch=0,
            grid=(num_tiles,),
            in_specs=[
                pl.BlockSpec((tile_b, feat_dim), lambda i: (i, 0)),       # feat tile (streamed)
                pl.BlockSpec((tile_b, 1), lambda i: (i, 0)),              # label tile
                pl.BlockSpec((feat_dim, num_classes), lambda i: (0, 0)),  # centers^T (resident)
                pl.BlockSpec((1, num_classes), lambda i: (0, 0)),         # ||c||^2 (resident)
            ],
            out_specs=pl.BlockSpec((1, 1), lambda i: (0, 0)),
            scratch_shapes=[pltpu.VMEM((1, 1), jnp.float32),   # d_own accumulator
                            pltpu.VMEM((1, 1), jnp.float32)],  # d_all accumulator
        ),
        compiler_params=pltpu.CompilerParams(
            dimension_semantics=("arbitrary",)),   # reduction axis -> accumulator output
        cost_estimate=cost,
    )(feat2d, label2d, centers_t, c_sq)

    # Matches torch: scalar / batch_size_tensor -> shape (1,)
    return out.reshape(1)


def _reference_loss(feat, label, centers, size_average=True):
    """Pure-JAX reference of CenterlossFuncA.forward (labels in {0,1,2})."""
    batch = feat.shape[0]
    f = feat.reshape(batch, -1).astype(jnp.float32)
    c = centers.astype(jnp.float32)
    d = jnp.sum((f[:, None, :] - c[None, :, :]) ** 2, axis=-1)  # (B, C)
    d_own = jnp.sum(jnp.take_along_axis(d, label[:, None].astype(jnp.int32), axis=1))
    distocen = jnp.sum(d) - d_own
    bs = batch if size_average else 1
    return (d_own * (1.0 + 1.0 / distocen) / 2.0 / bs).reshape(1)


if __name__ == "__main__":
    num_classes = 3   # CenterlossFuncA only handles labels 0/1/2
    feat_dim = 32
    batch = 8

    key = jax.random.PRNGKey(0)
    k_centers, k_feat, k_label = jax.random.split(key, 3)

    # Deterministic "parameter" init: torch.randn(num_classes, feat_dim)
    centers = jax.random.normal(k_centers, (num_classes, feat_dim), dtype=jnp.float32)
    feat = jax.random.normal(k_feat, (batch, feat_dim), dtype=jnp.float32)
    label = jax.random.randint(k_label, (batch,), 0, num_classes, dtype=jnp.int32)

    # 1) Default single-tile path.
    loss = center_loss_a(feat, label, centers)
    jax.block_until_ready(loss)
    ref = _reference_loss(feat, label, centers)
    np.testing.assert_allclose(np.asarray(loss), np.asarray(ref), rtol=1e-4, atol=1e-5)

    # 2) Multi-tile accumulation path (even tile split, mask compiled out).
    batch2 = 24
    k_feat2, k_label2 = jax.random.split(jax.random.PRNGKey(1), 2)
    feat2 = jax.random.normal(k_feat2, (batch2, feat_dim), dtype=jnp.float32)
    label2 = jax.random.randint(k_label2, (batch2,), 0, num_classes, dtype=jnp.int32)
    loss2 = center_loss_a(feat2, label2, centers, tile_b=8)
    jax.block_until_ready(loss2)
    ref2 = _reference_loss(feat2, label2, centers)
    np.testing.assert_allclose(np.asarray(loss2), np.asarray(ref2), rtol=1e-4, atol=1e-5)

    # 3) Partial last tile (exercises the row-mask path).
    batch3 = 20
    k_feat3, k_label3 = jax.random.split(jax.random.PRNGKey(2), 2)
    feat3 = jax.random.normal(k_feat3, (batch3, feat_dim), dtype=jnp.float32)
    label3 = jax.random.randint(k_label3, (batch3,), 0, num_classes, dtype=jnp.int32)
    loss3 = center_loss_a(feat3, label3, centers, tile_b=8)
    jax.block_until_ready(loss3)
    ref3 = _reference_loss(feat3, label3, centers)
    np.testing.assert_allclose(np.asarray(loss3), np.asarray(ref3), rtol=1e-4, atol=1e-5)

    print("KERNEL_OK")
</pallas_src>

<mosaic_0001>
module attributes {stable_mosaic.version = 11 : i64} {
  func.func @_center_loss_kernel(%arg0: i32, %arg1: memref<8x32xf32, #tpu.memory_space<vmem>>, %arg2: memref<8x1xi32, #tpu.memory_space<vmem>>, %arg3: memref<32x3xf32, #tpu.memory_space<vmem>>, %arg4: memref<1x3xf32, #tpu.memory_space<vmem>>, %arg5: memref<1x1xf32, #tpu.memory_space<vmem>>, %arg6: memref<1x1xf32, #tpu.memory_space<vmem>>, %arg7: memref<1x1xf32, #tpu.memory_space<vmem>>) attributes {dimension_semantics = [#tpu.dimension_semantics<arbitrary>], iteration_bounds = array<i64: 1>, scalar_prefetch = 0 : i64, scratch_operands = 2 : i64, tpu.core_type = #tpu.core_type<tc>, window_params = [{transform_indices = @transform_0, window_bounds = array<i64: 8, 32>}, {transform_indices = @transform_1, window_bounds = array<i64: 8, 1>}, {pipeline_mode = #tpu.pipeline_mode<synchronous>, transform_indices = @transform_2, window_bounds = array<i64: 32, 3>}, {pipeline_mode = #tpu.pipeline_mode<synchronous>, transform_indices = @transform_3, window_bounds = array<i64: 1, 3>}, {pipeline_mode = #tpu.pipeline_mode<synchronous>, transform_indices = @transform_4, window_bounds = array<i64: 1, 1>}]} {
    %c0_i32 = arith.constant 0 : i32
    %0 = arith.cmpi eq, %arg0, %c0_i32 : i32
    %1 = arith.extui %0 : i1 to i32
    %c0_i32_0 = arith.constant 0 : i32
    %2 = arith.cmpi ne, %1, %c0_i32_0 : i32
    scf.if %2 {
      %cst_23 = arith.constant 0.000000e+00 : f32
      %41 = vector.broadcast %cst_23 : f32 to vector<1x1xf32>
      %c0_24 = arith.constant 0 : index
      %c0_25 = arith.constant 0 : index
      %42 = vector.load %arg6[%c0_24, %c0_25] : memref<1x1xf32, #tpu.memory_space<vmem>>, vector<1x1xf32>
      tpu.vector_store %arg6[%c0_24, %c0_25], %41 {strides = array<i32>} : memref<1x1xf32, #tpu.memory_space<vmem>>, vector<1x1xf32>,
      %cst_26 = arith.constant 0.000000e+00 : f32
      %43 = vector.broadcast %cst_26 : f32 to vector<1x1xf32>
      %c0_27 = arith.constant 0 : index
      %c0_28 = arith.constant 0 : index
      %44 = vector.load %arg7[%c0_27, %c0_28] : memref<1x1xf32, #tpu.memory_space<vmem>>, vector<1x1xf32>
      tpu.vector_store %arg7[%c0_27, %c0_28], %43 {strides = array<i32>} : memref<1x1xf32, #tpu.memory_space<vmem>>, vector<1x1xf32>,
    } else {
    }
    %c0 = arith.constant 0 : index
    %c0_1 = arith.constant 0 : index
    %3 = vector.load %arg1[%c0, %c0_1] : memref<8x32xf32, #tpu.memory_space<vmem>>, vector<8x32xf32>
    %c0_2 = arith.constant 0 : index
    %c0_3 = arith.constant 0 : index
    %4 = vector.load %arg2[%c0_2, %c0_3] : memref<8x1xi32, #tpu.memory_space<vmem>>, vector<8x1xi32>
    %c0_4 = arith.constant 0 : index
    %c0_5 = arith.constant 0 : index
    %5 = vector.load %arg3[%c0_4, %c0_5] : memref<32x3xf32, #tpu.memory_space<vmem>>, vector<32x3xf32>
    %c0_6 = arith.constant 0 : index
    %c0_7 = arith.constant 0 : index
    %6 = vector.load %arg4[%c0_6, %c0_7] : memref<1x3xf32, #tpu.memory_space<vmem>>, vector<1x3xf32>
    %7 = arith.mulf %3, %3 : vector<8x32xf32>
    %cst = arith.constant dense<0.000000e+00> : vector<8xf32>
    %8 = vector.multi_reduction <add>, %7, %cst [1] : vector<8x32xf32> to vector<8xf32>
    %9 = vector.shape_cast %8 : vector<8xf32> to vector<8x1xf32>
    %cst_8 = arith.constant dense<0.000000e+00> : vector<8x3xf32>
    %10 = tpu.matmul %3, %5, %cst_8 {dimension_numbers = #tpu.dot_dimension_numbers<[1], [0], [0], [1], [0, 0, 1, 1], [], []>, precision = #tpu.contract_precision<fp32>} : vector<8x32xf32>, vector<32x3xf32>, vector<8x3xf32> -> vector<8x3xf32>
    %cst_9 = arith.constant 2.000000e+00 : f32
    %11 = vector.broadcast %cst_9 : f32 to vector<8x3xf32>
    %12 = arith.mulf %11, %10 : vector<8x3xf32>
    %13 = vector.broadcast %9 : vector<8x1xf32> to vector<8x3xf32>
    %14 = arith.subf %13, %12 : vector<8x3xf32>
    %15 = vector.broadcast %6 : vector<1x3xf32> to vector<8x3xf32>
    %16 = arith.addf %14, %15 : vector<8x3xf32>
    %17 = tpu.iota {dimensions = array<i32: 1>} : vector<8x3xi32>
    %18 = vector.broadcast %4 : vector<8x1xi32> to vector<8x3xi32>
    %19 = arith.cmpi eq, %17, %18 : vector<8x3xi32>
    %c0_10 = arith.constant 0 : index
    %c0_11 = arith.constant 0 : index
    %20 = vector.load %arg6[%c0_10, %c0_11] : memref<1x1xf32, #tpu.memory_space<vmem>>, vector<1x1xf32>
    %cst_12 = arith.constant 0.000000e+00 : f32
    %21 = vector.broadcast %cst_12 : f32 to vector<8x3xf32>
    %22 = arith.select %19, %16, %21 : vector<8x3xi1>, vector<8x3xf32>
    %23 = vector.shape_cast %22 : vector<8x3xf32> to vector<1x8x3xf32>
    %cst_13 = arith.constant dense<0.000000e+00> : vector<1xf32>
    %24 = vector.multi_reduction <add>, %23, %cst_13 [1, 2] : vector<1x8x3xf32> to vector<1xf32>
    %25 = vector.shape_cast %24 : vector<1xf32> to vector<1x1x1xf32>
    %26 = vector.extract %25[0, 0, 0] : f32 from vector<1x1x1xf32>
    %27 = vector.broadcast %26 : f32 to vector<1x1xf32>
    %28 = arith.addf %20, %27 : vector<1x1xf32>
    %c0_14 = arith.constant 0 : index
    %c0_15 = arith.constant 0 : index
    %29 = vector.load %arg6[%c0_14, %c0_15] : memref<1x1xf32, #tpu.memory_space<vmem>>, vector<1x1xf32>
    tpu.vector_store %arg6[%c0_14, %c0_15], %28 {strides = array<i32>} : memref<1x1xf32, #tpu.memory_space<vmem>>, vector<1x1xf32>,
    %c0_16 = arith.constant 0 : index
    %c0_17 = arith.constant 0 : index
    %30 = vector.load %arg7[%c0_16, %c0_17] : memref<1x1xf32, #tpu.memory_space<vmem>>, vector<1x1xf32>
    %31 = vector.shape_cast %16 : vector<8x3xf32> to vector<1x8x3xf32>
    %cst_18 = arith.constant dense<0.000000e+00> : vector<1xf32>
    %32 = vector.multi_reduction <add>, %31, %cst_18 [1, 2] : vector<1x8x3xf32> to vector<1xf32>
    %33 = vector.shape_cast %32 : vector<1xf32> to vector<1x1x1xf32>
    %34 = vector.extract %33[0, 0, 0] : f32 from vector<1x1x1xf32>
    %35 = vector.broadcast %34 : f32 to vector<1x1xf32>
    %36 = arith.addf %30, %35 : vector<1x1xf32>
    %c0_19 = arith.constant 0 : index
    %c0_20 = arith.constant 0 : index
    %37 = vector.load %arg7[%c0_19, %c0_20] : memref<1x1xf32, #tpu.memory_space<vmem>>, vector<1x1xf32>
    tpu.vector_store %arg7[%c0_19, %c0_20], %36 {strides = array<i32>} : memref<1x1xf32, #tpu.memory_space<vmem>>, vector<1x1xf32>,
    %c0_i32_21 = arith.constant 0 : i32
    %38 = arith.cmpi eq, %arg0, %c0_i32_21 : i32
    %39 = arith.extui %38 : i1 to i32
    %c0_i32_22 = arith.constant 0 : i32
    %40 = arith.cmpi ne, %39, %c0_i32_22 : i32
    scf.if %40 {
      %c0_23 = arith.constant 0 : index
      %c0_24 = arith.constant 0 : index
      %41 = vector.load %arg6[%c0_23, %c0_24] : memref<1x1xf32, #tpu.memory_space<vmem>>, vector<1x1xf32>
      %c0_25 = arith.constant 0 : index
      %c0_26 = arith.constant 0 : index
      %42 = vector.load %arg7[%c0_25, %c0_26] : memref<1x1xf32, #tpu.memory_space<vmem>>, vector<1x1xf32>
      %43 = arith.subf %42, %41 : vector<1x1xf32>
      %cst_27 = arith.constant 1.000000e+00 : f32
      %44 = vector.broadcast %cst_27 : f32 to vector<1x1xf32>
      %45 = arith.divf %44, %43 : vector<1x1xf32>
      %cst_28 = arith.constant 1.000000e+00 : f32
      %46 = vector.broadcast %cst_28 : f32 to vector<1x1xf32>
      %47 = arith.addf %46, %45 : vector<1x1xf32>
      %48 = arith.mulf %41, %47 : vector<1x1xf32>
      %cst_29 = arith.constant 6.250000e-02 : f32
      %49 = vector.broadcast %cst_29 : f32 to vector<1x1xf32>
      %50 = arith.mulf %48, %49 : vector<1x1xf32>
      %c0_30 = arith.constant 0 : index
      %c0_31 = arith.constant 0 : index
      %51 = vector.load %arg5[%c0_30, %c0_31] : memref<1x1xf32, #tpu.memory_space<vmem>>, vector<1x1xf32>
      tpu.vector_store %arg5[%c0_30, %c0_31], %50 {strides = array<i32>} : memref<1x1xf32, #tpu.memory_space<vmem>>, vector<1x1xf32>,
    } else {
    }
    return
  }
  func.func @transform_0(%arg0: i32) -> (i32, i32) {
    %c0_i32 = arith.constant 0 : i32
    %c0_i32_0 = arith.constant 0 : i32
    return %arg0, %c0_i32 : i32, i32
  }
  func.func @transform_1(%arg0: i32) -> (i32, i32) {
    %c0_i32 = arith.constant 0 : i32
    %c0_i32_0 = arith.constant 0 : i32
    return %arg0, %c0_i32 : i32, i32
  }
  func.func @transform_2(%arg0: i32) -> (i32, i32) {
    %c0_i32 = arith.constant 0 : i32
    %c0_i32_0 = arith.constant 0 : i32
    %c0_i32_1 = arith.constant 0 : i32
    return %c0_i32, %c0_i32_0 : i32, i32
  }
  func.func @transform_3(%arg0: i32) -> (i32, i32) {
    %c0_i32 = arith.constant 0 : i32
    %c0_i32_0 = arith.constant 0 : i32
    %c0_i32_1 = arith.constant 0 : i32
    return %c0_i32, %c0_i32_0 : i32, i32
  }
  func.func @transform_4(%arg0: i32) -> (i32, i32) {
    %c0_i32 = arith.constant 0 : i32
    %c0_i32_0 = arith.constant 0 : i32
    %c0_i32_1 = arith.constant 0 : i32
    return %c0_i32, %c0_i32_0 : i32, i32
  }
}

</mosaic_0001>

<llo_original>
// kernel: tpu_custom_call.1
$region0: #{tpu_custom_call.1}
  #allocation0 [shape = 'u32[]', space=smem, size = 0x4, offset = 0x4, fixed_abs, tag = 'smem constant byte address 0x4 - core index']
  #allocation1 [shape = 'u32[72,128]{1,0:T(1,128)}', space=vmem, size = 0x9000, scoped, tag = 'internal scratch']
  #allocation2 [shape = 'f32[1,1]{1,0:T(1,128)}', space=vmem, size = 0x200, scoped, tag = 'scratch operand']
  #allocation3 [shape = 'f32[1,1]{1,0:T(1,128)}', space=vmem, size = 0x200, scoped, tag = 'scratch operand']
  %s0 = inlined_call_operand.vmem [shape: f32[8,32], index: 0, kind: input, shape index: {}]
  %s1 = inlined_call_operand.vmem [shape: s32[8,1], index: 1, kind: input, shape index: {}]
  %s2 = inlined_call_operand.vmem [shape: f32[32,3], index: 2, kind: input, shape index: {}]
  %s3 = inlined_call_operand.vmem [shape: f32[1,3], index: 3, kind: input, shape index: {}]
  %s4 = inlined_call_operand.hbm [shape: f32[1,1], index: 4, kind: output, shape index: {}]
  %s5 = sld [smem:[#allocation0]]
  $region34: #{tpu_custom_call.1} parent=0
    _
  %s7 = ssub.s32 1, %s5
  %s8 = scalar_select 0, %s7, %s5
  $region1: #{tpu_custom_call.1} parent=0
    #allocation4 [shape = 'u8[512]{0}', space=vmem, size = 0x400, scoped, tag = 'output window, operand 0, single buffered']
    #allocation5 [shape = 's32[1]{0}', space=sflag, size = 0x4, scoped, tag = 'scoped memory for tpu_custom_call.1']
    %9 = vsyncpa [#allocation5], 0
    // Predicated region
    $region2: #{tpu_custom_call.1} parent=1 // pred_check
      _
    $region3: #{tpu_custom_call.1} parent=1 // pred_check_branch
      %11 = sbr.rel (0) target = $region5
    $region4: #{tpu_custom_call.1} parent=1 // pred_region
      _
    $region5: #{tpu_custom_call.1} parent=1 // pred_fallthru
      _
    // Predicated region
    $region6: #{tpu_custom_call.1} parent=1 // pred_check
      _
    $region7: #{tpu_custom_call.1} parent=1 // pred_check_branch
      %13 = sbr.rel (0) target = $region9
    $region8: #{tpu_custom_call.1} parent=1 // pred_region
      _
    $region9: #{tpu_custom_call.1} parent=1 // pred_fallthru
      _
    // Predicated region
    $region10: #{tpu_custom_call.1} parent=1 // pred_check
      _
    $region11: #{tpu_custom_call.1} parent=1 // pred_check_branch
      %15 = sbr.rel (0) target = $region13
    $region12: #{tpu_custom_call.1} parent=1 // pred_region
      _
    $region13: #{tpu_custom_call.1} parent=1 // pred_fallthru
      _
    // Predicated region
    $region14: #{tpu_custom_call.1} parent=1 // pred_check
      _
    $region15: #{tpu_custom_call.1} parent=1 // pred_check_branch
      %17 = sbr.rel (0) target = $region17
    $region16: #{tpu_custom_call.1} parent=1 // pred_region
      _
    $region17: #{tpu_custom_call.1} parent=1 // pred_fallthru
      _
    %p18 = scmp.eq.s32.totalorder 0, 0
    // Predicated region
    $region18: #{tpu_custom_call.1} parent=1 // pred_check
      %p19 = pneg %p18
    $region19: #{tpu_custom_call.1} parent=1 // pred_check_branch
      %21 = sbr.rel (%p19) target = $region21
    $region20: #{tpu_custom_call.1} parent=1 // pred_region
      %vm22 = vcmask 0
      %23 = vst.msk [vmem:[#allocation2] sm:$0x1] %vm22, 0.0
      %24 = vst.msk [vmem:[#allocation3] sm:$0x1] %vm22, 0.0
    $region21: #{tpu_custom_call.1} parent=1 // pred_fallthru
      _
    %v25 = vld [vmem:[%s0] sm:$0xff]
    %v26 = vld [vmem:[%s1] sm:$0xff]
    %v27 = vld [vmem:[%s2] sm:$0xff]
    %v28 = vld [vmem:[%s2 + $0x8] sm:$0xff]
    %v29 = vld [vmem:[%s2 + $0x10] sm:$0xff]
    %v30 = vld [vmem:[%s2 + $0x18] sm:$0xff]
    %v31 = vld [vmem:[%s3] sm:$0x1]
    %v32 = vmul.f32 %v25, %v25
    %vm33 = vcmask 261120
    %v34 = vsel %vm33, %v32, 0.0
    %35 = vadd.xlane.f32.xlu0 %v34
    %v36 = vpop.xlane.xlu0 %35
    %v38 = vsel %vm33, %v25, 0
    %40 = vmatpush.msra.mxu0 0.0
    %41 = vmatpush.msra.mxu0 0.0
    %42 = vmatpush.msra.mxu0 0.0
    %43 = vmatpush.msra.mxu0 0.0
    %44 = vmatpush.msra.mxu0 0.0
    %45 = vmatpush.msra.mxu0 0.0
    %46 = vmatpush.msra.mxu0 0.0
    %47 = vmatpush.msra.mxu0 0.0
    %48 = vmatpush.msra.mxu0 0.0
    %49 = vmatpush.msra.mxu0 0.0
    %50 = vmatpush.msra.mxu0 0.0
    %51 = vmatpush.msra.mxu0 0.0
    %v52 = vand.u32 %v30, 4294901760
    %53 = vmatpush.msra.mxu0 %v52
    %v54 = vand.u32 %v29, 4294901760
    %55 = vmatpush.msra.mxu0 %v54
    %v56 = vand.u32 %v28, 4294901760
    %57 = vmatpush.msra.mxu0 %v56
    %v58 = vand.u32 %v27, 4294901760
    %59 = vmatpush.msra.mxu0 %v58
    %v60 = vand.u32 %v38, 4294901760
    %v61 = vsub.f32 %v38, %v60
    %v62 = vand.u32 %v61, 4294901760
    %v63 = vsub.f32 %v61, %v62
    %v64 = vand.u32 %v63, 4294901760
    %65 = vmatmul.f32.gmra.mxu0 %v64
    %v66 = vpop.f32.mrf.mxu0
    %v67 = vadd.f32 0.0, %v66
    %68 = vdwg.mxu0
    %69 = vmatpush.msra.mxu0 0.0
    %70 = vmatpush.msra.mxu0 0.0
    %71 = vmatpush.msra.mxu0 0.0
    %72 = vmatpush.msra.mxu0 0.0
    %73 = vmatpush.msra.mxu0 0.0
    %74 = vmatpush.msra.mxu0 0.0
    %75 = vmatpush.msra.mxu0 0.0
    %76 = vmatpush.msra.mxu0 0.0
    %77 = vmatpush.msra.mxu0 0.0
    %78 = vmatpush.msra.mxu0 0.0
    %79 = vmatpush.msra.mxu0 0.0
    %80 = vmatpush.msra.mxu0 0.0
    %v81 = vand.u32 %v30, 4294901760
    %v82 = vsub.f32 %v30, %v81
    %v83 = vand.u32 %v82, 4294901760
    %v84 = vsub.f32 %v82, %v83
    %v85 = vand.u32 %v84, 4294901760
    %86 = vmatpush.msra.mxu0 %v85
    %v87 = vand.u32 %v29, 4294901760
    %v88 = vsub.f32 %v29, %v87
    %v89 = vand.u32 %v88, 4294901760
    %v90 = vsub.f32 %v88, %v89
    %v91 = vand.u32 %v90, 4294901760
    %92 = vmatpush.msra.mxu0 %v91
    %v93 = vand.u32 %v28, 4294901760
    %v94 = vsub.f32 %v28, %v93
    %v95 = vand.u32 %v94, 4294901760
    %v96 = vsub.f32 %v94, %v95
    %v97 = vand.u32 %v96, 4294901760
    %98 = vmatpush.msra.mxu0 %v97
    %v99 = vand.u32 %v27, 4294901760
    %v100 = vsub.f32 %v27, %v99
    %v101 = vand.u32 %v100, 4294901760
    %v102 = vsub.f32 %v100, %v101
    %v103 = vand.u32 %v102, 4294901760
    %104 = vmatpush.msra.mxu0 %v103
    %v105 = vand.u32 %v38, 4294901760
    %106 = vmatmul.f32.gmra.mxu0 %v105
    %v107 = vpop.f32.mrf.mxu0
    %v108 = vadd.f32 %v67, %v107
    %109 = vdwg.mxu0
    %110 = vmatpush.msra.mxu0 0.0
    %111 = vmatpush.msra.mxu0 0.0
    %112 = vmatpush.msra.mxu0 0.0
    %113 = vmatpush.msra.mxu0 0.0
    %114 = vmatpush.msra.mxu0 0.0
    %115 = vmatpush.msra.mxu0 0.0
    %116 = vmatpush.msra.mxu0 0.0
    %117 = vmatpush.msra.mxu0 0.0
    %118 = vmatpush.msra.mxu0 0.0
    %119 = vmatpush.msra.mxu0 0.0
    %120 = vmatpush.msra.mxu0 0.0
    %121 = vmatpush.msra.mxu0 0.0
    %v122 = vand.u32 %v30, 4294901760
    %v123 = vsub.f32 %v30, %v122
    %124 = vmatpush.msra.mxu0 %v123
    %v125 = vand.u32 %v29, 4294901760
    %v126 = vsub.f32 %v29, %v125
    %127 = vmatpush.msra.mxu0 %v126
    %v128 = vand.u32 %v28, 4294901760
    %v129 = vsub.f32 %v28, %v128
    %130 = vmatpush.msra.mxu0 %v129
    %v131 = vand.u32 %v27, 4294901760
    %v132 = vsub.f32 %v27, %v131
    %133 = vmatpush.msra.mxu0 %v132
    %v134 = vand.u32 %v38, 4294901760
    %v135 = vsub.f32 %v38, %v134
    %136 = vmatmul.f32.gmra.mxu0 %v135
    %v137 = vpop.f32.mrf.mxu0
    %v138 = vadd.f32 %v108, %v137
    %139 = vdwg.mxu0
    %140 = vmatpush.msra.mxu0 0.0
    %141 = vmatpush.msra.mxu0 0.0
    %142 = vmatpush.msra.mxu0 0.0
    %143 = vmatpush.msra.mxu0 0.0
    %144 = vmatpush.msra.mxu0 0.0
    %145 = vmatpush.msra.mxu0 0.0
    %146 = vmatpush.msra.mxu0 0.0
    %147 = vmatpush.msra.mxu0 0.0
    %148 = vmatpush.msra.mxu0 0.0
    %149 = vmatpush.msra.mxu0 0.0
    %150 = vmatpush.msra.mxu0 0.0
    %151 = vmatpush.msra.mxu0 0.0
    %v152 = vand.u32 %v30, 4294901760
    %153 = vmatpush.msra.mxu0 %v152
    %v154 = vand.u32 %v29, 4294901760
    %155 = vmatpush.msra.mxu0 %v154
    %v156 = vand.u32 %v28, 4294901760
    %157 = vmatpush.msra.mxu0 %v156
    %v158 = vand.u32 %v27, 4294901760
    %159 = vmatpush.msra.mxu0 %v158
    %v160 = vand.u32 %v38, 4294901760
    %v161 = vsub.f32 %v38, %v160
    %v162 = vand.u32 %v161, 4294901760
    %163 = vmatmul.f32.gmra.mxu0 %v162
    %v164 = vpop.f32.mrf.mxu0
    %v165 = vadd.f32 %v138, %v164
    %166 = vdwg.mxu0
    %167 = vmatpush.msra.mxu0 0.0
    %168 = vmatpush.msra.mxu0 0.0
    %169 = vmatpush.msra.mxu0 0.0
    %170 = vmatpush.msra.mxu0 0.0
    %171 = vmatpush.msra.mxu0 0.0
    %172 = vmatpush.msra.mxu0 0.0
    %173 = vmatpush.msra.mxu0 0.0
    %174 = vmatpush.msra.mxu0 0.0
    %175 = vmatpush.msra.mxu0 0.0
    %176 = vmatpush.msra.mxu0 0.0
    %177 = vmatpush.msra.mxu0 0.0
    %178 = vmatpush.msra.mxu0 0.0
    %v179 = vand.u32 %v30, 4294901760
    %v180 = vsub.f32 %v30, %v179
    %v181 = vand.u32 %v180, 4294901760
    %182 = vmatpush.msra.mxu0 %v181
    %v183 = vand.u32 %v29, 4294901760
    %v184 = vsub.f32 %v29, %v183
    %v185 = vand.u32 %v184, 4294901760
    %186 = vmatpush.msra.mxu0 %v185
    %v187 = vand.u32 %v28, 4294901760
    %v188 = vsub.f32 %v28, %v187
    %v189 = vand.u32 %v188, 4294901760
    %190 = vmatpush.msra.mxu0 %v189
    %v191 = vand.u32 %v27, 4294901760
    %v192 = vsub.f32 %v27, %v191
    %v193 = vand.u32 %v192, 4294901760
    %194 = vmatpush.msra.mxu0 %v193
    %v195 = vand.u32 %v38, 4294901760
    %196 = vmatmul.f32.gmra.mxu0 %v195
    %v197 = vpop.f32.mrf.mxu0
    %v198 = vadd.f32 %v165, %v197
    %199 = vdwg.mxu0
    %200 = vmatpush.msra.mxu0 0.0
    %201 = vmatpush.msra.mxu0 0.0
    %202 = vmatpush.msra.mxu0 0.0
    %203 = vmatpush.msra.mxu0 0.0
    %204 = vmatpush.msra.mxu0 0.0
    %205 = vmatpush.msra.mxu0 0.0
    %206 = vmatpush.msra.mxu0 0.0
    %207 = vmatpush.msra.mxu0 0.0
    %208 = vmatpush.msra.mxu0 0.0
    %209 = vmatpush.msra.mxu0 0.0
    %210 = vmatpush.msra.mxu0 0.0
    %211 = vmatpush.msra.mxu0 0.0
    %v212 = vand.u32 %v30, 4294901760
    %213 = vmatpush.msra.mxu0 %v212
    %v214 = vand.u32 %v29, 4294901760
    %215 = vmatpush.msra.mxu0 %v214
    %v216 = vand.u32 %v28, 4294901760
    %217 = vmatpush.msra.mxu0 %v216
    %v218 = vand.u32 %v27, 4294901760
    %219 = vmatpush.msra.mxu0 %v218
    %v220 = vand.u32 %v38, 4294901760
    %221 = vmatmul.f32.gmra.mxu0 %v220
    %v222 = vpop.f32.mrf.mxu0
    %v223 = vadd.f32 %v198, %v222
    %224 = vdwg.mxu0
    %v225 = vmul.f32 %v223, 2.0
    %v226 = vsub.f32 %v36, %v225
    %v228 = vperm.slane %v31, 0
    %v230 = vadd.f32 %v226, %v228
    %v231 = vlaneseq
    %v232 = vand.u32 %v231, 127
    %233 = vset.pattern.permute.xlu0 0
    %234 = vperm.xlu0 %233, %v26
    %v235 = vpop.permute.xlu0 %234
    %vm236 = vcmp.eq.s32.totalorder %v232, %v235
    %v237 = vld [vmem:[#allocation2] sm:$0x1]
    %v238 = vsel %vm236, %v230, 0.0
    %vm239 = vcmask 23552
    %v240 = vsel %vm239, %v238, 0.0
    %241 = vadd.xlane.f32.xlu0 %v240
    %v242 = vpop.xlane.xlu0 %241
    %v243 = vrot.slane %v242, 4
    %v244 = vadd.f32 %v242, %v243
    %v245 = vrot.slane %v244, 2
    %v246 = vadd.f32 %v244, %v245
    %v247 = vrot.slane %v246, 1
    %v248 = vadd.f32 %v246, %v247
    %s249 = vtos %v248
    %v250 = vstv %s249
    %v251 = vadd.f32 %v237, %v250
    %vm252 = vcmask 0
    %253 = vst.msk [vmem:[#allocation2] sm:$0x1] %vm252, %v251
    %v254 = vld [vmem:[#allocation3] sm:$0x1]
    %v255 = vsel %vm239, %v230, 0.0
    %256 = vadd.xlane.f32.xlu0 %v255
    %v257 = vpop.xlane.xlu0 %256
    %v258 = vrot.slane %v257, 4
    %v259 = vadd.f32 %v257, %v258
    %v260 = vrot.slane %v259, 2
    %v261 = vadd.f32 %v259, %v260
    %v262 = vrot.slane %v261, 1
    %v263 = vadd.f32 %v261, %v262
    %s264 = vtos %v263
    %v265 = vstv %s264
    %v266 = vadd.f32 %v254, %v265
    %267 = vst.msk [vmem:[#allocation3] sm:$0x1] %vm252, %v266
    // Predicated region
    $region22: #{tpu_custom_call.1} parent=1 // pred_check
      %p268 = pneg %p18
    $region23: #{tpu_custom_call.1} parent=1 // pred_check_branch
      %270 = sbr.rel (%p268) target = $region25
    $region24: #{tpu_custom_call.1} parent=1 // pred_region
      %v271 = vld [vmem:[#allocation2] sm:$0x1]
      %v272 = vld [vmem:[#allocation3] sm:$0x1]
      %v273 = vsub.f32 %v272, %v271
      %v274 = vrcp.pop %v273
      %v275 = vmul.f32 %v273, %v274
      %v276 = vsub.f32 1.0, %v275
      %v277 = vmul.f32 %v274, %v276
      %v278 = vadd.f32 %v274, %v277
      %vm279 = vweird.f32 %v273
      %vm280 = vweird.f32 %v274
      %vm281 = vmor %vm279, %vm280
      %v282 = vsel %vm281, %v274, %v278
      %v283 = vand.u32 2147483647, %v273
      %vm284 = vcmp.eq.f32.partialorder %v283, 8.507059e+37
      %v285 = vand.u32 %v273, 2147483648
      %v286 = vor.u32 1.1754944e-38, %v285
      %v287 = vsel %vm284, %v286, %v282
      %v288 = vmul.f32 1.0, %v287
      %v289 = vadd.f32 %v288, 1.0
      %v290 = vmul.f32 %v271, %v289
      %v291 = vmul.f32 %v290, 0.0625
      %292 = vst.msk [vmem:[#allocation4] sm:$0x1] %vm252, %v291
    $region25: #{tpu_custom_call.1} parent=1 // pred_fallthru
      _
    // Predicated region
    $region26: #{tpu_custom_call.1} parent=1 // pred_check
      _
    $region27: #{tpu_custom_call.1} parent=1 // pred_check_branch
      %294 = sbr.rel (0) target = $region29
    $region28: #{tpu_custom_call.1} parent=1 // pred_region
      %296 = vsyncadd [#allocation5], 0
      %s298 = sshll.u32 [#allocation4], 4
      %s299 = int_to_ptr.vmem [resolvable:$true] %s298
      %s300 = sshll.u32 %s4, 4
      %s301 = int_to_ptr.hbm [resolvable:$true] %s300
      %303 = dma.vmem_to_hbm [thread:$0]  %s299, 16, %s301, [#allocation5]
    $region29: #{tpu_custom_call.1} parent=1 // pred_fallthru
      _
    // Predicated region
    $region30: #{tpu_custom_call.1} parent=1 // pred_check
      _
    $region31: #{tpu_custom_call.1} parent=1 // pred_check_branch
      %305 = sbr.rel (0) target = $region33
    $region32: #{tpu_custom_call.1} parent=1 // pred_region
      %307 = dma.done [#allocation5], 16
    $region33: #{tpu_custom_call.1} parent=1 // pred_fallthru
      _
    %308 = vsyncpa [#allocation5], 1

</llo_original>
